<compile_context>
chip_gen: v6e
topology: v6e:2x2x1
jax: 0.10.0
libtpu: 0.0.40
codegen_flags: <defaults>
</compile_context>

<pallas_src>
import jax
import jax.numpy as jnp
from jax.experimental import pallas as pl
from jax.experimental.pallas import tpu as pltpu

CLIP_FEAT_DIM = 1024  # CLIP RN50 visual output dim feeding nn.Linear(1024, hidden)


def _round_up(x, m):
    return ((x + m - 1) // m) * m


def _choose_tile(total, max_tile, quantum):
    """Largest multiple of `quantum` that divides `total` and is <= max_tile.

    `total` must itself be a multiple of `quantum`.
    """
    t = max(quantum, (min(max_tile, total) // quantum) * quantum)
    while t > quantum and total % t != 0:
        t -= quantum
    return t


def _make_kernel(resident_w, tk):
    def kernel(x_ref, w_ref, b_ref, out_ref):
        # Grid = (row tiles, K tiles); K is the reduction axis ("arbitrary").
        k = pl.program_id(1)

        # Output block index ignores k -> out_ref stays VMEM-resident across
        # the reduction and doubles as the f32 accumulator (no scratch copy).
        @pl.when(k == 0)
        def _():
            out_ref[...] = jnp.broadcast_to(b_ref[...], out_ref.shape)

        if resident_w:
            # Whole fused weight lives in VMEM; slice this K chunk in-kernel.
            w = w_ref[pl.ds(pl.multiple_of(k * tk, 128), tk), :]
        else:
            w = w_ref[...]

        # Cast x to bf16 right before the MXU push; f32 accumulation kept.
        out_ref[...] += jnp.dot(
            x_ref[...].astype(jnp.bfloat16), w,
            preferred_element_type=jnp.float32)

    return kernel


def _visual_embedding_pallas(images, w_fused, bias, *, tm_max=512, tk_max=8192,
                             vmem_budget=48 * 1024 * 1024):
    """images [B,N,C,H,W] f32, w_fused [K1_pad, Hd] (bf16), bias [1, Hd] f32."""
    B, N, C, H, W = images.shape
    M = B * N
    K1 = C * H * W
    K1p, Hd = w_fused.shape
    assert K1p == _round_up(K1, 128)

    # Reshape is a view for contiguous input; pad only when shapes force it.
    x = images.reshape(M, K1).astype(jnp.float32)
    M_pad = _round_up(M, 8)
    if M_pad != M or K1p != K1:
        x = jnp.pad(x, ((0, M_pad - M), (0, K1p - K1)))

    # Row tile: multiple of 8, divides M_pad; keep grid[0] >= 2 when possible
    # so the "parallel" row axis can shard across both v7x TensorCores.
    tm_cap = tm_max if M_pad < 16 else min(tm_max, M_pad // 2)
    tm = _choose_tile(M_pad, tm_cap, 8)

    # Weight residency: keep the whole fused weight in VMEM when its
    # (double-buffered) footprint is small -- loaded once, no restream per
    # row tile.  Otherwise stream (tk, Hd) tiles along K.
    w_bytes = w_fused.size * w_fused.dtype.itemsize
    resident_w = 2 * w_bytes <= vmem_budget // 2

    # K tile: multiple of 128 dividing K1p, shrunk until the estimate fits VMEM.
    tk_cap = tk_max
    while True:
        tk = _choose_tile(K1p, tk_cap, 128)
        est = (2 * tm * tk * 4                                            # x (f32, dbl-buf)
               + (2 * w_bytes if resident_w
                  else 2 * tk * Hd * w_fused.dtype.itemsize)              # weight
               + 2 * tm * Hd * 4 + 2 * Hd * 4)                            # out + bias
        if est <= vmem_budget or tk_cap <= 128:
            break
        tk_cap //= 2

    grid = (M_pad // tm, K1p // tk)

    if resident_w:
        w_spec = pl.BlockSpec((K1p, Hd), lambda i, k: (0, 0))
    else:
        w_spec = pl.BlockSpec((tk, Hd), lambda i, k: (k, 0))

    cost = pl.CostEstimate(
        flops=2 * M_pad * K1p * Hd,
        transcendentals=0,
        bytes_accessed=(M_pad * K1p * 4                                   # x read once (f32)
                        + w_bytes * (1 if resident_w else grid[0])        # weight
                        + Hd * 4
                        + M_pad * Hd * 4),                                # output
    )

    out = pl.pallas_call(
        _make_kernel(resident_w, tk),
        out_shape=jax.ShapeDtypeStruct((M_pad, Hd), jnp.float32),
        grid_spec=pltpu.PrefetchScalarGridSpec(
            num_scalar_prefetch=0,
            grid=grid,
            in_specs=[
                pl.BlockSpec((tm, tk), lambda i, k: (i, k)),   # x tile (f32)
                w_spec,                                        # fused weight
                pl.BlockSpec((1, Hd), lambda i, k: (0, 0)),    # bias
            ],
            out_specs=pl.BlockSpec((tm, Hd), lambda i, k: (i, 0)),
        ),
        compiler_params=pltpu.CompilerParams(
            dimension_semantics=("parallel", "arbitrary"),
            vmem_limit_bytes=min(vmem_budget + (8 << 20), 56 * 1024 * 1024),
        ),
        cost_estimate=cost,
    )(x, w_fused, bias)

    return out[:M, :].reshape(B, N, Hd)


def make_visual_embedding(w_img, w_lin, b_lin, *, weight_dtype=jnp.bfloat16):
    """Factory: all weight prep (fusion GEMM, K-pad, casts) runs ONCE here."""
    K1, feat = w_img.shape
    feat2, Hd = w_lin.shape
    assert feat == CLIP_FEAT_DIM and feat2 == CLIP_FEAT_DIM

    # Exact fusion of the linear stand-in backbone with nn.Linear (f32 GEMM).
    w_fused = jnp.dot(w_img.astype(jnp.float32), w_lin.astype(jnp.float32))
    K1p = _round_up(K1, 128)
    if K1p != K1:
        w_fused = jnp.pad(w_fused, ((0, K1p - K1), (0, 0)))
    # weight_dtype=jnp.float32 trades 2x weight bandwidth for tighter numerics.
    w_fused = jax.block_until_ready(w_fused.astype(weight_dtype))
    bias = jax.block_until_ready(b_lin.reshape(1, Hd).astype(jnp.float32))

    fwd = jax.jit(lambda imgs, w, b: _visual_embedding_pallas(imgs, w, b))

    def forward(images):
        return fwd(images, w_fused, bias)

    return forward


if __name__ == "__main__":
    # Small shapes consistent with the forward: images [B, N, C, H, W].
    B, N, C, H, W = 2, 4, 3, 16, 16
    hidden = 32
    K1 = C * H * W

    key = jax.random.PRNGKey(0)
    k_img, k_wimg, k_wlin, k_blin = jax.random.split(key, 4)

    images = jax.random.normal(k_img, (B, N, C, H, W), dtype=jnp.float32)
    # Deterministic synthetic parameters (no checkpoint load).
    w_img = jax.random.normal(k_wimg, (K1, CLIP_FEAT_DIM), dtype=jnp.float32) * 0.02
    w_lin = jax.random.normal(k_wlin, (CLIP_FEAT_DIM, hidden), dtype=jnp.float32) * 0.02
    b_lin = jax.random.normal(k_blin, (hidden,), dtype=jnp.float32) * 0.02

    forward = make_visual_embedding(w_img, w_lin, b_lin)
    out = jax.block_until_ready(forward(images))

    # Pure-JAX reference with the same semantics (two f32 linears).
    feats_ref = images.reshape(B * N, K1) @ w_img
    ref = feats_ref.reshape(B, N, CLIP_FEAT_DIM) @ w_lin + b_lin
    assert out.shape == (B, N, hidden)
    # bf16 fused weight + in-kernel bf16 x cast (f32 accumulation) -> loose tol.
    assert jnp.allclose(out, ref, atol=5e-2, rtol=5e-2), "mismatch vs JAX reference"

    print("KERNEL_OK")
</pallas_src>

<mosaic_0001>
module attributes {stable_mosaic.version = 11 : i64} {
  func.func @kernel(%arg0: i32, %arg1: i32, %arg2: memref<8x768xf32, #tpu.memory_space<vmem>>, %arg3: memref<768x32xbf16, #tpu.memory_space<vmem>>, %arg4: memref<1x32xf32, #tpu.memory_space<vmem>>, %arg5: memref<8x32xf32, #tpu.memory_space<vmem>>) attributes {dimension_semantics = [#tpu.dimension_semantics<parallel>, #tpu.dimension_semantics<arbitrary>], iteration_bounds = array<i64: 1, 1>, scalar_prefetch = 0 : i64, scratch_operands = 0 : i64, tpu.core_type = #tpu.core_type<tc>, window_params = [{transform_indices = @transform_0, window_bounds = array<i64: 8, 768>}, {pipeline_mode = #tpu.pipeline_mode<synchronous>, transform_indices = @transform_1, window_bounds = array<i64: 768, 32>}, {pipeline_mode = #tpu.pipeline_mode<synchronous>, transform_indices = @transform_2, window_bounds = array<i64: 1, 32>}, {transform_indices = @transform_3, window_bounds = array<i64: 8, 32>}]} {
    %c0_i32 = arith.constant 0 : i32
    %0 = arith.cmpi eq, %arg1, %c0_i32 : i32
    %1 = arith.extui %0 : i1 to i32
    %c0_i32_0 = arith.constant 0 : i32
    %2 = arith.cmpi ne, %1, %c0_i32_0 : i32
    scf.if %2 {
      %c0_7 = arith.constant 0 : index
      %c0_8 = arith.constant 0 : index
      %13 = vector.load %arg4[%c0_7, %c0_8] : memref<1x32xf32, #tpu.memory_space<vmem>>, vector<1x32xf32>
      %14 = vector.shape_cast %13 : vector<1x32xf32> to vector<1x32xf32>
      %15 = vector.broadcast %14 : vector<1x32xf32> to vector<8x32xf32>
      %c0_9 = arith.constant 0 : index
      %c0_10 = arith.constant 0 : index
      %16 = vector.load %arg5[%c0_9, %c0_10] : memref<8x32xf32, #tpu.memory_space<vmem>>, vector<8x32xf32>
      tpu.vector_store %arg5[%c0_9, %c0_10], %15 {strides = array<i32>} : memref<8x32xf32, #tpu.memory_space<vmem>>, vector<8x32xf32>,
    } else {
    }
    %c768_i32 = arith.constant 768 : i32
    %3 = arith.muli %arg1, %c768_i32 : i32
    %4 = tpu.assume_multiple %3, 128 : i32
    %5 = arith.index_cast %4 : i32 to index
    %c0 = arith.constant 0 : index
    %6 = vector.load %arg3[%5, %c0] : memref<768x32xbf16, #tpu.memory_space<vmem>>, vector<768x32xbf16>
    %c0_1 = arith.constant 0 : index
    %c0_2 = arith.constant 0 : index
    %7 = vector.load %arg5[%c0_1, %c0_2] : memref<8x32xf32, #tpu.memory_space<vmem>>, vector<8x32xf32>
    %c0_3 = arith.constant 0 : index
    %c0_4 = arith.constant 0 : index
    %8 = vector.load %arg2[%c0_3, %c0_4] : memref<8x768xf32, #tpu.memory_space<vmem>>, vector<8x768xf32>
    %9 = arith.truncf %8 : vector<8x768xf32> to vector<8x768xbf16>
    %cst = arith.constant dense<0.000000e+00> : vector<8x32xf32>
    %10 = tpu.matmul %9, %6, %cst {dimension_numbers = #tpu.dot_dimension_numbers<[1], [0], [0], [1], [0, 0, 1, 1], [], []>} : vector<8x768xbf16>, vector<768x32xbf16>, vector<8x32xf32> -> vector<8x32xf32>
    %11 = arith.addf %7, %10 : vector<8x32xf32>
    %c0_5 = arith.constant 0 : index
    %c0_6 = arith.constant 0 : index
    %12 = vector.load %arg5[%c0_5, %c0_6] : memref<8x32xf32, #tpu.memory_space<vmem>>, vector<8x32xf32>
    tpu.vector_store %arg5[%c0_5, %c0_6], %11 {strides = array<i32>} : memref<8x32xf32, #tpu.memory_space<vmem>>, vector<8x32xf32>,
    return
  }
  func.func @transform_0(%arg0: i32, %arg1: i32) -> (i32, i32) {
    %c0_i32 = arith.constant 0 : i32
    return %arg0, %arg1 : i32, i32
  }
  func.func @transform_1(%arg0: i32, %arg1: i32) -> (i32, i32) {
    %c0_i32 = arith.constant 0 : i32
    %c0_i32_0 = arith.constant 0 : i32
    %c0_i32_1 = arith.constant 0 : i32
    return %c0_i32, %c0_i32_0 : i32, i32
  }
  func.func @transform_2(%arg0: i32, %arg1: i32) -> (i32, i32) {
    %c0_i32 = arith.constant 0 : i32
    %c0_i32_0 = arith.constant 0 : i32
    %c0_i32_1 = arith.constant 0 : i32
    return %c0_i32, %c0_i32_0 : i32, i32
  }
  func.func @transform_3(%arg0: i32, %arg1: i32) -> (i32, i32) {
    %c0_i32 = arith.constant 0 : i32
    %c0_i32_0 = arith.constant 0 : i32
    return %arg0, %c0_i32 : i32, i32
  }
}

</mosaic_0001>

<llo_original>
// kernel: _lambda_.1
$region0: #{_lambda_.1}
  #allocation0 [shape = 'u32[]', space=smem, size = 0x4, offset = 0x4, fixed_abs, tag = 'smem constant byte address 0x4 - core index']
  #allocation1 [shape = 'u32[144,128]{1,0:T(1,128)}', space=vmem, size = 0x12000, scoped, tag = 'internal scratch']
  %s0 = inlined_call_operand.vmem [shape: f32[8,768], index: 0, kind: input, shape index: {}]
  %s1 = inlined_call_operand.vmem [shape: bf16[768,32], index: 1, kind: input, shape index: {}]
  %s2 = inlined_call_operand.vmem [shape: f32[1,32], index: 2, kind: input, shape index: {}]
  %s3 = inlined_call_operand.hbm [shape: f32[8,32], index: 3, kind: output, shape index: {}]
  %s4 = sld [smem:[#allocation0]]
  $region26: #{_lambda_.1} parent=0
    _
  %s6 = ssub.s32 1, %s4
  %s7 = scalar_select 0, %s6, %s4
  $region1: #{_lambda_.1} parent=0
    #allocation2 [shape = 'u8[4096]{0}', space=vmem, size = 0x1000, scoped, tag = 'output window, operand 0, single buffered']
    #allocation3 [shape = 's32[1]{0}', space=sflag, size = 0x4, scoped, tag = 'scoped memory for _lambda_.1']
    %8 = vsyncpa [#allocation3], 0
    // Predicated region
    $region2: #{_lambda_.1} parent=1 // pred_check
      _
    $region3: #{_lambda_.1} parent=1 // pred_check_branch
      %10 = sbr.rel (0) target = $region5
    $region4: #{_lambda_.1} parent=1 // pred_region
      _
    $region5: #{_lambda_.1} parent=1 // pred_fallthru
      _
    // Predicated region
    $region6: #{_lambda_.1} parent=1 // pred_check
      _
    $region7: #{_lambda_.1} parent=1 // pred_check_branch
      %12 = sbr.rel (0) target = $region9
    $region8: #{_lambda_.1} parent=1 // pred_region
      _
    $region9: #{_lambda_.1} parent=1 // pred_fallthru
      _
    // Predicated region
    $region10: #{_lambda_.1} parent=1 // pred_check
      _
    $region11: #{_lambda_.1} parent=1 // pred_check_branch
      %14 = sbr.rel (0) target = $region13
    $region12: #{_lambda_.1} parent=1 // pred_region
      _
    $region13: #{_lambda_.1} parent=1 // pred_fallthru
      _
    %p16 = scmp.eq.s32.totalorder 0, 0
    // Predicated region
    $region14: #{_lambda_.1} parent=1 // pred_check
      %p17 = pneg %p16
    $region15: #{_lambda_.1} parent=1 // pred_check_branch
      %19 = sbr.rel (%p17) target = $region17
    $region16: #{_lambda_.1} parent=1 // pred_region
      %v20 = vld [vmem:[%s2] sm:$0x1]
      %v22 = vlaneseq
      %v23 = vshrl.u32 %v22, 7
      %v24 = vsub.s32 0, %v23
      %v25 = vrot.slane %v20, %v24
      %vm27 = vcmask 261120
      %28 = vst.msk [vmem:[#allocation2] sm:$0xff] %vm27, %v25
    $region17: #{_lambda_.1} parent=1 // pred_fallthru
      _
    %s29 = smul.u32 0, 768
    %s30 = sshra.s32 %s29, 3
    %s31 = sand.u32 %s29, 7
    %s32 = smul.addr %s30, 4
    %s33 = scalar_lea.vmem %s1, %s32
    %v34 = vld [vmem:[%s33] sm:$0xf]
    %v35 = vld [vmem:[%s33 + $0x4] sm:$0xf]
    %v36 = vld [vmem:[%s33 + $0x8] sm:$0xf]
    %v37 = vld [vmem:[%s33 + $0xc] sm:$0xf]
    %v38 = vld [vmem:[%s33 + $0x10] sm:$0xf]
    %v39 = vld [vmem:[%s33 + $0x14] sm:$0xf]
    %v40 = vld [vmem:[%s33 + $0x18] sm:$0xf]
    %v41 = vld [vmem:[%s33 + $0x1c] sm:$0xf]
    %v42 = vld [vmem:[%s33 + $0x20] sm:$0xf]
    %v43 = vld [vmem:[%s33 + $0x24] sm:$0xf]
    %v44 = vld [vmem:[%s33 + $0x28] sm:$0xf]
    %v45 = vld [vmem:[%s33 + $0x2c] sm:$0xf]
    %v46 = vld [vmem:[%s33 + $0x30] sm:$0xf]
    %v47 = vld [vmem:[%s33 + $0x34] sm:$0xf]
    %v48 = vld [vmem:[%s33 + $0x38] sm:$0xf]
    %v49 = vld [vmem:[%s33 + $0x3c] sm:$0xf]
    %v50 = vld [vmem:[%s33 + $0x40] sm:$0xf]
    %v51 = vld [vmem:[%s33 + $0x44] sm:$0xf]
    %v52 = vld [vmem:[%s33 + $0x48] sm:$0xf]
    %v53 = vld [vmem:[%s33 + $0x4c] sm:$0xf]
    %v54 = vld [vmem:[%s33 + $0x50] sm:$0xf]
    %v55 = vld [vmem:[%s33 + $0x54] sm:$0xf]
    %v56 = vld [vmem:[%s33 + $0x58] sm:$0xf]
    %v57 = vld [vmem:[%s33 + $0x5c] sm:$0xf]
    %v58 = vld [vmem:[%s33 + $0x60] sm:$0xf]
    %v59 = vld [vmem:[%s33 + $0x64] sm:$0xf]
    %v60 = vld [vmem:[%s33 + $0x68] sm:$0xf]
    %v61 = vld [vmem:[%s33 + $0x6c] sm:$0xf]
    %v62 = vld [vmem:[%s33 + $0x70] sm:$0xf]
    %v63 = vld [vmem:[%s33 + $0x74] sm:$0xf]
    %v64 = vld [vmem:[%s33 + $0x78] sm:$0xf]
    %v65 = vld [vmem:[%s33 + $0x7c] sm:$0xf]
    %v66 = vld [vmem:[%s33 + $0x80] sm:$0xf]
    %v67 = vld [vmem:[%s33 + $0x84] sm:$0xf]
    %v68 = vld [vmem:[%s33 + $0x88] sm:$0xf]
    %v69 = vld [vmem:[%s33 + $0x8c] sm:$0xf]
    %v70 = vld [vmem:[%s33 + $0x90] sm:$0xf]
    %v71 = vld [vmem:[%s33 + $0x94] sm:$0xf]
    %v72 = vld [vmem:[%s33 + $0x98] sm:$0xf]
    %v73 = vld [vmem:[%s33 + $0x9c] sm:$0xf]
    %v74 = vld [vmem:[%s33 + $0xa0] sm:$0xf]
    %v75 = vld [vmem:[%s33 + $0xa4] sm:$0xf]
    %v76 = vld [vmem:[%s33 + $0xa8] sm:$0xf]
    %v77 = vld [vmem:[%s33 + $0xac] sm:$0xf]
    %v78 = vld [vmem:[%s33 + $0xb0] sm:$0xf]
    %v79 = vld [vmem:[%s33 + $0xb4] sm:$0xf]
    %v80 = vld [vmem:[%s33 + $0xb8] sm:$0xf]
    %v81 = vld [vmem:[%s33 + $0xbc] sm:$0xf]
    %v82 = vld [vmem:[%s33 + $0xc0] sm:$0xf]
    %v83 = vld [vmem:[%s33 + $0xc4] sm:$0xf]
    %v84 = vld [vmem:[%s33 + $0xc8] sm:$0xf]
    %v85 = vld [vmem:[%s33 + $0xcc] sm:$0xf]
    %v86 = vld [vmem:[%s33 + $0xd0] sm:$0xf]
    %v87 = vld [vmem:[%s33 + $0xd4] sm:$0xf]
    %v88 = vld [vmem:[%s33 + $0xd8] sm:$0xf]
    %v89 = vld [vmem:[%s33 + $0xdc] sm:$0xf]
    %v90 = vld [vmem:[%s33 + $0xe0] sm:$0xf]
    %v91 = vld [vmem:[%s33 + $0xe4] sm:$0xf]
    %v92 = vld [vmem:[%s33 + $0xe8] sm:$0xf]
    %v93 = vld [vmem:[%s33 + $0xec] sm:$0xf]
    %v94 = vld [vmem:[%s33 + $0xf0] sm:$0xf]
    %v95 = vld [vmem:[%s33 + $0xf4] sm:$0xf]
    %v96 = vld [vmem:[%s33 + $0xf8] sm:$0xf]
    %v97 = vld [vmem:[%s33 + $0xfc] sm:$0xf]
    %v98 = vld [vmem:[%s33 + $0x100] sm:$0xf]
    %v99 = vld [vmem:[%s33 + $0x104] sm:$0xf]
    %v100 = vld [vmem:[%s33 + $0x108] sm:$0xf]
    %v101 = vld [vmem:[%s33 + $0x10c] sm:$0xf]
    %v102 = vld [vmem:[%s33 + $0x110] sm:$0xf]
    %v103 = vld [vmem:[%s33 + $0x114] sm:$0xf]
    %v104 = vld [vmem:[%s33 + $0x118] sm:$0xf]
    %v105 = vld [vmem:[%s33 + $0x11c] sm:$0xf]
    %v106 = vld [vmem:[%s33 + $0x120] sm:$0xf]
    %v107 = vld [vmem:[%s33 + $0x124] sm:$0xf]
    %v108 = vld [vmem:[%s33 + $0x128] sm:$0xf]
    %v109 = vld [vmem:[%s33 + $0x12c] sm:$0xf]
    %v110 = vld [vmem:[%s33 + $0x130] sm:$0xf]
    %v111 = vld [vmem:[%s33 + $0x134] sm:$0xf]
    %v112 = vld [vmem:[%s33 + $0x138] sm:$0xf]
    %v113 = vld [vmem:[%s33 + $0x13c] sm:$0xf]
    %v114 = vld [vmem:[%s33 + $0x140] sm:$0xf]
    %v115 = vld [vmem:[%s33 + $0x144] sm:$0xf]
    %v116 = vld [vmem:[%s33 + $0x148] sm:$0xf]
    %v117 = vld [vmem:[%s33 + $0x14c] sm:$0xf]
    %v118 = vld [vmem:[%s33 + $0x150] sm:$0xf]
    %v119 = vld [vmem:[%s33 + $0x154] sm:$0xf]
    %v120 = vld [vmem:[%s33 + $0x158] sm:$0xf]
    %v121 = vld [vmem:[%s33 + $0x15c] sm:$0xf]
    %v122 = vld [vmem:[%s33 + $0x160] sm:$0xf]
    %v123 = vld [vmem:[%s33 + $0x164] sm:$0xf]
    %v124 = vld [vmem:[%s33 + $0x168] sm:$0xf]
    %v125 = vld [vmem:[%s33 + $0x16c] sm:$0xf]
    %v126 = vld [vmem:[%s33 + $0x170] sm:$0xf]
    %v127 = vld [vmem:[%s33 + $0x174] sm:$0xf]
    %v128 = vld [vmem:[%s33 + $0x178] sm:$0xf]
    %v129 = vld [vmem:[%s33 + $0x17c] sm:$0xf]
    %v130 = vld [vmem:[#allocation2] sm:$0xff]
    %v131 = vld [vmem:[%s0] sm:$0xff]
    %v132 = vld [vmem:[%s0 + $0x8] sm:$0xff]
    %v133 = vld [vmem:[%s0 + $0x10] sm:$0xff]
    %v134 = vld [vmem:[%s0 + $0x18] sm:$0xff]
    %v135 = vld [vmem:[%s0 + $0x20] sm:$0xff]
    %v136 = vld [vmem:[%s0 + $0x28] sm:$0xff]
    %v137 = vpack.c.bf16 %v131, %v131
    %v138 = vpack.c.bf16 %v132, %v132
    %v139 = vpack.c.bf16 %v133, %v133
    %v140 = vpack.c.bf16 %v134, %v134
    %v141 = vpack.c.bf16 %v135, %v135
    %v142 = vpack.c.bf16 %v136, %v136
    %v239 = vunpack.c.l.b16 %v34
    %v240 = vunpack.c.l.b16 %v35
    %v241 = vunpack.c.l.b16 %v36
    %v242 = vunpack.c.l.b16 %v37
    %v243 = vunpack.c.l.b16 %v38
    %v244 = vunpack.c.l.b16 %v39
    %v245 = vunpack.c.l.b16 %v40
    %v246 = vunpack.c.l.b16 %v41
    %v247 = vunpack.c.l.b16 %v42
    %v248 = vunpack.c.l.b16 %v43
    %v249 = vunpack.c.l.b16 %v44
    %v250 = vunpack.c.l.b16 %v45
    %v251 = vunpack.c.l.b16 %v46
    %v252 = vunpack.c.l.b16 %v47
    %v253 = vunpack.c.l.b16 %v48
    %v254 = vunpack.c.l.b16 %v49
    %v255 = vunpack.c.l.b16 %v50
    %v256 = vunpack.c.l.b16 %v51
    %v257 = vunpack.c.l.b16 %v52
    %v258 = vunpack.c.l.b16 %v53
    %v259 = vunpack.c.l.b16 %v54
    %v260 = vunpack.c.l.b16 %v55
    %v261 = vunpack.c.l.b16 %v56
    %v262 = vunpack.c.l.b16 %v57
    %v263 = vunpack.c.l.b16 %v58
    %v264 = vunpack.c.l.b16 %v59
    %v265 = vunpack.c.l.b16 %v60
    %v266 = vunpack.c.l.b16 %v61
    %v267 = vunpack.c.l.b16 %v62
    %v268 = vunpack.c.l.b16 %v63
    %v269 = vunpack.c.l.b16 %v64
    %v270 = vunpack.c.l.b16 %v65
    %v271 = vunpack.c.l.b16 %v66
    %v272 = vunpack.c.l.b16 %v67
    %v273 = vunpack.c.l.b16 %v68
    %v274 = vunpack.c.l.b16 %v69
    %v275 = vunpack.c.l.b16 %v70
    %v276 = vunpack.c.l.b16 %v71
    %v277 = vunpack.c.l.b16 %v72
    %v278 = vunpack.c.l.b16 %v73
    %v279 = vunpack.c.l.b16 %v74
    %v280 = vunpack.c.l.b16 %v75
    %v281 = vunpack.c.l.b16 %v76
    %v282 = vunpack.c.l.b16 %v77
    %v283 = vunpack.c.l.b16 %v78
    %v284 = vunpack.c.l.b16 %v79
    %v285 = vunpack.c.l.b16 %v80
    %v286 = vunpack.c.l.b16 %v81
    %v287 = vunpack.c.l.b16 %v82
    %v288 = vunpack.c.l.b16 %v83
    %v289 = vunpack.c.l.b16 %v84
    %v290 = vunpack.c.l.b16 %v85
    %v291 = vunpack.c.l.b16 %v86
    %v292 = vunpack.c.l.b16 %v87
    %v293 = vunpack.c.l.b16 %v88
    %v294 = vunpack.c.l.b16 %v89
    %v295 = vunpack.c.l.b16 %v90
    %v296 = vunpack.c.l.b16 %v91
    %v297 = vunpack.c.l.b16 %v92
    %v298 = vunpack.c.l.b16 %v93
    %v299 = vunpack.c.l.b16 %v94
    %v300 = vunpack.c.l.b16 %v95
    %v301 = vunpack.c.l.b16 %v96
    %v302 = vunpack.c.l.b16 %v97
    %v303 = vunpack.c.l.b16 %v98
    %v304 = vunpack.c.l.b16 %v99
    %v305 = vunpack.c.l.b16 %v100
    %v306 = vunpack.c.l.b16 %v101
    %v307 = vunpack.c.l.b16 %v102
    %v308 = vunpack.c.l.b16 %v103
    %v309 = vunpack.c.l.b16 %v104
    %v310 = vunpack.c.l.b16 %v105
    %v311 = vunpack.c.l.b16 %v106
    %v312 = vunpack.c.l.b16 %v107
    %v313 = vunpack.c.l.b16 %v108
    %v314 = vunpack.c.l.b16 %v109
    %v315 = vunpack.c.l.b16 %v110
    %v316 = vunpack.c.l.b16 %v111
    %v317 = vunpack.c.l.b16 %v112
    %v318 = vunpack.c.l.b16 %v113
    %v319 = vunpack.c.l.b16 %v114
    %v320 = vunpack.c.l.b16 %v115
    %v321 = vunpack.c.l.b16 %v116
    %v322 = vunpack.c.l.b16 %v117
    %v323 = vunpack.c.l.b16 %v118
    %v324 = vunpack.c.l.b16 %v119
    %v325 = vunpack.c.l.b16 %v120
    %v326 = vunpack.c.l.b16 %v121
    %v327 = vunpack.c.l.b16 %v122
    %v328 = vunpack.c.l.b16 %v123
    %v329 = vunpack.c.l.b16 %v124
    %v330 = vunpack.c.l.b16 %v125
    %v331 = vunpack.c.l.b16 %v126
    %v332 = vunpack.c.l.b16 %v127
    %v333 = vunpack.c.l.b16 %v128
    %v334 = vunpack.c.l.b16 %v129
    %v335 = vpack.c.b16 %v240, %v239
    %v336 = vpack.c.b16 %v242, %v241
    %v337 = vpack.c.b16 %v244, %v243
    %v338 = vpack.c.b16 %v246, %v245
    %v339 = vpack.c.b16 %v248, %v247
    %v340 = vpack.c.b16 %v250, %v249
    %v341 = vpack.c.b16 %v252, %v251
    %v342 = vpack.c.b16 %v254, %v253
    %v343 = vpack.c.b16 %v256, %v255
    %v344 = vpack.c.b16 %v258, %v257
    %v345 = vpack.c.b16 %v260, %v259
    %v346 = vpack.c.b16 %v262, %v261
    %v347 = vpack.c.b16 %v264, %v263
    %v348 = vpack.c.b16 %v266, %v265
    %v349 = vpack.c.b16 %v268, %v267
    %v350 = vpack.c.b16 %v270, %v269
    %v351 = vpack.c.b16 %v272, %v271
    %v352 = vpack.c.b16 %v274, %v273
    %v353 = vpack.c.b16 %v276, %v275
    %v354 = vpack.c.b16 %v278, %v277
    %v355 = vpack.c.b16 %v280, %v279
    %v356 = vpack.c.b16 %v282, %v281
    %v357 = vpack.c.b16 %v284, %v283
    %v358 = vpack.c.b16 %v286, %v285
    %v359 = vpack.c.b16 %v288, %v287
    %v360 = vpack.c.b16 %v290, %v289
    %v361 = vpack.c.b16 %v292, %v291
    %v362 = vpack.c.b16 %v294, %v293
    %v363 = vpack.c.b16 %v296, %v295
    %v364 = vpack.c.b16 %v298, %v297
    %v365 = vpack.c.b16 %v300, %v299
    %v366 = vpack.c.b16 %v302, %v301
    %v367 = vpack.c.b16 %v304, %v303
    %v368 = vpack.c.b16 %v306, %v305
    %v369 = vpack.c.b16 %v308, %v307
    %v370 = vpack.c.b16 %v310, %v309
    %v371 = vpack.c.b16 %v312, %v311
    %v372 = vpack.c.b16 %v314, %v313
    %v373 = vpack.c.b16 %v316, %v315
    %v374 = vpack.c.b16 %v318, %v317
    %v375 = vpack.c.b16 %v320, %v319
    %v376 = vpack.c.b16 %v322, %v321
    %v377 = vpack.c.b16 %v324, %v323
    %v378 = vpack.c.b16 %v326, %v325
    %v379 = vpack.c.b16 %v328, %v327
    %v380 = vpack.c.b16 %v330, %v329
    %v381 = vpack.c.b16 %v332, %v331
    %v382 = vpack.c.b16 %v334, %v333
    %431 = vmatprep.subr.bf16.mxu0 0
    %432 = vmatpush1.bf16.msra.mxu0 %v342
    %433 = vmatprep.subr.bf16.mxu0 0
    %434 = vmatpush1.bf16.msra.mxu0 %v341
    %435 = vmatprep.subr.bf16.mxu0 0
    %436 = vmatpush1.bf16.msra.mxu0 %v340
    %437 = vmatprep.subr.bf16.mxu0 0
    %438 = vmatpush1.bf16.msra.mxu0 %v339
    %439 = vmatprep.subr.bf16.mxu0 0
    %440 = vmatpush1.bf16.msra.mxu0 %v338
    %441 = vmatprep.subr.bf16.mxu0 0
    %442 = vmatpush1.bf16.msra.mxu0 %v337
    %443 = vmatprep.subr.bf16.mxu0 0
    %444 = vmatpush1.bf16.msra.mxu0 %v336
    %445 = vmatprep.subr.bf16.mxu0 0
    %446 = vmatpush1.bf16.msra.mxu0 %v335
    %447 = vmatprep.subr.bf16.mxu0 0
    %448 = vmatpush2.bf16.msra.mxu0 %v350
    %449 = vmatprep.subr.bf16.mxu0 0
    %450 = vmatpush2.bf16.msra.mxu0 %v349
    %451 = vmatprep.subr.bf16.mxu0 0
    %452 = vmatpush2.bf16.msra.mxu0 %v348
    %453 = vmatprep.subr.bf16.mxu0 0
    %454 = vmatpush2.bf16.msra.mxu0 %v347
    %455 = vmatprep.subr.bf16.mxu0 0
    %456 = vmatpush2.bf16.msra.mxu0 %v346
    %457 = vmatprep.subr.bf16.mxu0 0
    %458 = vmatpush2.bf16.msra.mxu0 %v345
    %459 = vmatprep.subr.bf16.mxu0 0
    %460 = vmatpush2.bf16.msra.mxu0 %v344
    %461 = vmatprep.subr.bf16.mxu0 0
    %462 = vmatpush2.bf16.msra.mxu0 %v343
    %463 = vmatprep.mubr.bf16.mxu0 %v138
    %464 = vmatmul.mubr.bf16.gmra.mxu0 %v137
    %v465 = vpop.f32.mrf.mxu0
    %v466 = vadd.f32 0.0, %v465
    %v467 = vpop.f32.mrf.mxu0
    %v468 = vpop.f32.mrf.mxu0
    %v469 = vpop.f32.mrf.mxu0
    %470 = vdwg.mxu0
    %471 = vmatprep.subr.bf16.mxu0 0
    %472 = vmatpush1.bf16.msra.mxu0 %v358
    %473 = vmatprep.subr.bf16.mxu0 0
    %474 = vmatpush1.bf16.msra.mxu0 %v357
    %475 = vmatprep.subr.bf16.mxu0 0
    %476 = vmatpush1.bf16.msra.mxu0 %v356
    %477 = vmatprep.subr.bf16.mxu0 0
    %478 = vmatpush1.bf16.msra.mxu0 %v355
    %479 = vmatprep.subr.bf16.mxu0 0
    %480 = vmatpush1.bf16.msra.mxu0 %v354
    %481 = vmatprep.subr.bf16.mxu0 0
    %482 = vmatpush1.bf16.msra.mxu0 %v353
    %483 = vmatprep.subr.bf16.mxu0 0
    %484 = vmatpush1.bf16.msra.mxu0 %v352
    %485 = vmatprep.subr.bf16.mxu0 0
    %486 = vmatpush1.bf16.msra.mxu0 %v351
    %487 = vmatprep.subr.bf16.mxu0 0
    %488 = vmatpush2.bf16.msra.mxu0 %v366
    %489 = vmatprep.subr.bf16.mxu0 0
    %490 = vmatpush2.bf16.msra.mxu0 %v365
    %491 = vmatprep.subr.bf16.mxu0 0
    %492 = vmatpush2.bf16.msra.mxu0 %v364
    %493 = vmatprep.subr.bf16.mxu0 0
    %494 = vmatpush2.bf16.msra.mxu0 %v363
    %495 = vmatprep.subr.bf16.mxu0 0
    %496 = vmatpush2.bf16.msra.mxu0 %v362
    %497 = vmatprep.subr.bf16.mxu0 0
    %498 = vmatpush2.bf16.msra.mxu0 %v361
    %499 = vmatprep.subr.bf16.mxu0 0
    %500 = vmatpush2.bf16.msra.mxu0 %v360
    %501 = vmatprep.subr.bf16.mxu0 0
    %502 = vmatpush2.bf16.msra.mxu0 %v359
    %503 = vmatprep.mubr.bf16.mxu0 %v140
    %504 = vmatmul.mubr.bf16.gmra.mxu0 %v139
    %v505 = vpop.f32.mrf.mxu0
    %v506 = vadd.f32 %v466, %v505
    %v507 = vpop.f32.mrf.mxu0
    %v508 = vpop.f32.mrf.mxu0
    %v509 = vpop.f32.mrf.mxu0
    %510 = vdwg.mxu0
    %511 = vmatprep.subr.bf16.mxu0 0
    %512 = vmatpush1.bf16.msra.mxu0 %v374
    %513 = vmatprep.subr.bf16.mxu0 0
    %514 = vmatpush1.bf16.msra.mxu0 %v373
    %515 = vmatprep.subr.bf16.mxu0 0
    %516 = vmatpush1.bf16.msra.mxu0 %v372
    %517 = vmatprep.subr.bf16.mxu0 0
    %518 = vmatpush1.bf16.msra.mxu0 %v371
    %519 = vmatprep.subr.bf16.mxu0 0
    %520 = vmatpush1.bf16.msra.mxu0 %v370
    %521 = vmatprep.subr.bf16.mxu0 0
    %522 = vmatpush1.bf16.msra.mxu0 %v369
    %523 = vmatprep.subr.bf16.mxu0 0
    %524 = vmatpush1.bf16.msra.mxu0 %v368
    %525 = vmatprep.subr.bf16.mxu0 0
    %526 = vmatpush1.bf16.msra.mxu0 %v367
    %527 = vmatprep.subr.bf16.mxu0 0
    %528 = vmatpush2.bf16.msra.mxu0 %v382
    %529 = vmatprep.subr.bf16.mxu0 0
    %530 = vmatpush2.bf16.msra.mxu0 %v381
    %531 = vmatprep.subr.bf16.mxu0 0
    %532 = vmatpush2.bf16.msra.mxu0 %v380
    %533 = vmatprep.subr.bf16.mxu0 0
    %534 = vmatpush2.bf16.msra.mxu0 %v379
    %535 = vmatprep.subr.bf16.mxu0 0
    %536 = vmatpush2.bf16.msra.mxu0 %v378
    %537 = vmatprep.subr.bf16.mxu0 0
    %538 = vmatpush2.bf16.msra.mxu0 %v377
    %539 = vmatprep.subr.bf16.mxu0 0
    %540 = vmatpush2.bf16.msra.mxu0 %v376
    %541 = vmatprep.subr.bf16.mxu0 0
    %542 = vmatpush2.bf16.msra.mxu0 %v375
    %543 = vmatprep.mubr.bf16.mxu0 %v142
    %544 = vmatmul.mubr.bf16.gmra.mxu0 %v141
    %v545 = vpop.f32.mrf.mxu0
    %v546 = vadd.f32 %v506, %v545
    %v547 = vpop.f32.mrf.mxu0
    %v548 = vpop.f32.mrf.mxu0
    %v549 = vpop.f32.mrf.mxu0
    %550 = vdwg.mxu0
    %v551 = vadd.f32 %v130, %v546
    %vm552 = vcmask 261120
    %553 = vst.msk [vmem:[#allocation2] sm:$0xff] %vm552, %v551
    // Predicated region
    $region18: #{_lambda_.1} parent=1 // pred_check
      _
    $region19: #{_lambda_.1} parent=1 // pred_check_branch
      %555 = sbr.rel (0) target = $region21
    $region20: #{_lambda_.1} parent=1 // pred_region
      %s557 = ssub.s32 128, 128
      %558 = vsyncadd [#allocation3], %s557
      %s560 = sshll.u32 [#allocation2], 4
      %s561 = int_to_ptr.vmem [resolvable:$true] %s560
      %563 = dma.vmem_to_hbm [thread:$0]  %s561, 128, %s3, [#allocation3]
    $region21: #{_lambda_.1} parent=1 // pred_fallthru
      _
    // Predicated region
    $region22: #{_lambda_.1} parent=1 // pred_check
      _
    $region23: #{_lambda_.1} parent=1 // pred_check_branch
      %565 = sbr.rel (0) target = $region25
    $region24: #{_lambda_.1} parent=1 // pred_region
      %566 = dma.done [#allocation3], 128
    $region25: #{_lambda_.1} parent=1 // pred_fallthru
      _
    %567 = vsyncpa [#allocation3], 1

</llo_original>
